<compile_context>
chip_gen: v7x
topology: tpu7x:2x2x1
jax: 0.10.0
libtpu: 0.0.40
codegen_flags: <defaults>
</compile_context>

<pallas_src>
import functools

import jax
import jax.numpy as jnp
from jax.experimental import pallas as pl
from jax.experimental.pallas import tpu as pltpu


def _round_up(x: int, m: int) -> int:
    return ((x + m - 1) // m) * m


def _vmem_limit_bytes() -> int:
    """Scoped-VMEM limit: ~3/4 of physical, capped at 96 MiB (safe on v5e/v6e/v7x)."""
    try:
        phys = pltpu.get_tpu_info().vmem_capacity_bytes
    except Exception:
        phys = 64 * 1024 * 1024  # conservative (v7x per-TensorCore)
    return int(min(96 * 1024 * 1024, (phys * 3) // 4))


def _pick_tile_b(b: int, c: int, itemsize: int, vmem_limit: int, granule: int) -> int:
    """Byte-based batch-tile sizing for the streaming path.

    Only the (tb, C) logits tile is double-buffered; in-kernel temps are a
    couple more tile-sized buffers, so budget ~vmem_limit/4 per tile and target
    ~8-16 MiB of logits per grid step (per-step overhead ~0.35 us)."""
    per_tile_budget = min(max(vmem_limit // 4, 1 << 20), 16 * 1024 * 1024)
    tb = per_tile_budget // max(c * itemsize, 1)
    tb = max(granule, min(32768, (tb // granule) * granule))
    # Keep >= 2 tiles when the batch is big enough: the "parallel" grid axis
    # then actually shards across both TensorCores on v7x (costs ~nothing on
    # single-TC v5e/v6e: one extra ~0.35 us grid step).
    if b >= 2 * granule:
        tb = min(tb, _round_up(pl.cdiv(b, 2), granule))
    return min(tb, _round_up(b, granule))


def _class_scores_stream_kernel(batch_ref, target_ref, out_ref, *, true_b: int):
    # batch_ref:  (tb, C) native-dtype scores in VMEM (last block may be partial)
    # target_ref: (tb, 1) i32 class indices in VMEM
    # out_ref:    (1, 128) f32 lane-dense per-tile partial sum
    scores = batch_ref[...]                               # (tb, C) native dtype
    tgt = target_ref[...]                                 # (tb, 1) i32
    tb, c = scores.shape

    # One-hot gather: class-index iota vs target column. Pure VPU work.
    col_idx = jax.lax.broadcasted_iota(jnp.int32, (tb, c), dimension=1)
    picked = jnp.where(col_idx == tgt, scores, jnp.zeros_like(scores))

    # Exactly one nonzero per row -> native-dtype lane reduce is exact; cast
    # only the small (tb, 1) result to f32 (no (tb, C) convert pass).
    row_sums = jnp.sum(picked, axis=-1, keepdims=True).astype(jnp.float32)

    # Mask rows beyond the true batch size (partial last block holds garbage);
    # applied AFTER the row sum so any junk/NaN is discarded by the select.
    row0 = pl.program_id(0) * tb
    row_idx = row0 + jax.lax.broadcasted_iota(jnp.int32, (tb, 1), dimension=0)
    masked = jnp.where(row_idx < true_b, row_sums, jnp.zeros_like(row_sums))

    # Per-tile partial sum, written lane-dense (128-wide, unmasked stores).
    tile_sum = jnp.sum(masked, axis=0, keepdims=True)     # (1, 1) f32
    out_ref[...] = jnp.broadcast_to(tile_sum, (1, 128))


def _class_scores_gather_kernel(tgt_sm, target_ref, batch_hbm, out_ref, buf, sem,
                                *, true_b: int):
    # tgt_sm:     (B,) i32 targets in SMEM (scalar prefetch) -- drives DMA addrs
    # target_ref: (tb, 1) i32 targets in VMEM -- vectorized lane select
    # batch_hbm:  (B, C) scores left in HBM (memory_space=pl.ANY)
    # out_ref:    (1, 128) f32 lane-dense per-tile partial sum
    # buf:        (tb, 128) native-dtype VMEM scratch (one window per row)
    # sem:        (1,) DMA semaphore shared by all row copies of this tile
    tb = buf.shape[0]
    row0 = pl.program_id(0) * tb

    # Issue one small DMA per row: only the 128-lane window holding target[i].
    # Row index is clamped so every DMA stays in bounds; clamped rows are
    # masked out of the sum below. (C % 128 == 0 on this path.)
    @pl.loop(0, tb)
    def _issue(r):
        i = jnp.minimum(row0 + r, true_b - 1)
        col0 = pl.multiple_of((tgt_sm[i] // 128) * 128, 128)
        pltpu.make_async_copy(
            batch_hbm.at[pl.ds(i, 1), pl.ds(col0, 128)],
            buf.at[pl.ds(r, 1)],
            sem.at[0],
        ).start()

    # Wait for all tb copies (same-size copies on one counting semaphore).
    @pl.loop(0, tb)
    def _wait(r):
        pltpu.make_async_copy(
            batch_hbm.at[pl.ds(0, 1), pl.ds(0, 128)],
            buf.at[pl.ds(r, 1)],
            sem.at[0],
        ).wait()

    window = buf[...]                                     # (tb, 128) native dtype
    tgt = target_ref[...]                                 # (tb, 1) i32
    lane_off = tgt - (tgt // 128) * 128                   # target pos inside its window
    lane_idx = jax.lax.broadcasted_iota(jnp.int32, (tb, 128), dimension=1)
    picked = jnp.where(lane_idx == lane_off, window, jnp.zeros_like(window))
    row_sums = jnp.sum(picked, axis=-1, keepdims=True).astype(jnp.float32)

    row_idx = row0 + jax.lax.broadcasted_iota(jnp.int32, (tb, 1), dimension=0)
    masked = jnp.where(row_idx < true_b, row_sums, jnp.zeros_like(row_sums))

    tile_sum = jnp.sum(masked, axis=0, keepdims=True)     # (1, 1) f32
    out_ref[...] = jnp.broadcast_to(tile_sum, (1, 128))


def class_scores_loss(batch: jax.Array, target: jax.Array, *,
                      tile_b: int | None = None,
                      use_gather: bool | None = None) -> jax.Array:
    """Pallas implementation of ClassScoresLoss.forward.

    Args:
      batch:      (B, C) scores, any float dtype (consumed in native dtype).
      target:     (B,)   integer class indices.
      tile_b:     optional batch-tile override (rounded to the dtype granule).
      use_gather: force (True) / forbid (False) the large-C gather path;
                  None = auto (C >= 2048 and C % 128 == 0).

    Returns:
      scalar loss in batch.dtype (reduction accumulated in f32).
    """
    B, C = batch.shape
    out_dtype = batch.dtype
    itemsize = jnp.dtype(batch.dtype).itemsize
    # Packed-sublane granule: 8 rows for 4-byte, 16 for bf16, 32 for int8/fp8.
    granule = max(8, 32 // max(itemsize, 1))
    vmem_limit = _vmem_limit_bytes()

    if use_gather is None:
        use_gather = (C % 128 == 0) and (C >= 2048)
    # Gather path needs 128-aligned, >=128-wide class axis; otherwise stream.
    use_gather = bool(use_gather) and (C % 128 == 0) and (C >= 128)

    target_i32 = target.astype(jnp.int32)
    target2d = target_i32.reshape(B, 1)

    if use_gather:
        tb = tile_b if tile_b is not None else 256
        tb = min(tb, _round_up(B, granule))
        tb = max(granule, (tb // granule) * granule)
        num_tiles = pl.cdiv(B, tb)
        kernel = functools.partial(_class_scores_gather_kernel, true_b=B)
        tile_sums = pl.pallas_call(
            kernel,
            out_shape=jax.ShapeDtypeStruct((num_tiles, 128), jnp.float32),
            grid_spec=pltpu.PrefetchScalarGridSpec(
                num_scalar_prefetch=1,
                grid=(num_tiles,),
                in_specs=[
                    pl.BlockSpec((tb, 1), lambda i, tgt: (i, 0)),  # targets (VMEM)
                    pl.BlockSpec(memory_space=pl.ANY),             # logits stay in HBM
                ],
                out_specs=pl.BlockSpec((1, 128), lambda i, tgt: (i, 0)),
                scratch_shapes=[
                    pltpu.VMEM((tb, 128), batch.dtype),
                    pltpu.SemaphoreType.DMA((1,)),
                ],
            ),
            compiler_params=pltpu.CompilerParams(
                dimension_semantics=("arbitrary",),  # conservative for manual-DMA path
                vmem_limit_bytes=vmem_limit,
            ),
        )(target_i32, target2d, batch)
    else:
        tb = tile_b if tile_b is not None else _pick_tile_b(B, C, itemsize, vmem_limit, granule)
        tb = max(granule, (tb // granule) * granule)
        num_tiles = pl.cdiv(B, tb)
        kernel = functools.partial(_class_scores_stream_kernel, true_b=B)
        tile_sums = pl.pallas_call(
            kernel,
            out_shape=jax.ShapeDtypeStruct((num_tiles, 128), jnp.float32),
            grid=(num_tiles,),
            in_specs=[
                pl.BlockSpec((tb, C), lambda i: (i, 0)),   # stream logits tiles (partial last OK)
                pl.BlockSpec((tb, 1), lambda i: (i, 0)),   # matching target rows
            ],
            out_specs=pl.BlockSpec((1, 128), lambda i: (i, 0)),
            compiler_params=pltpu.CompilerParams(
                dimension_semantics=("parallel",),          # independent tiles -> megacore OK
                vmem_limit_bytes=vmem_limit,
            ),
        )(batch, target2d)

    # Tiny wrapper epilogue: sum per-tile partials, divide by the TRUE B, negate.
    loss = -(jnp.sum(tile_sums[:, 0]) / jnp.float32(B))
    return loss.astype(out_dtype)


def _reference(batch, target):
    # Pure-JAX reference matching the PyTorch module exactly.
    return -jnp.mean(batch[jnp.arange(batch.shape[0]), target])


if __name__ == "__main__":
    key = jax.random.PRNGKey(0)
    k1, k2, k3, k4, k5, k6 = jax.random.split(key, 6)

    # 1) Tiny shape consistent with the module: batch=2, num_classes=4.
    B, C = 2, 4
    batch = jax.random.normal(k1, (B, C), dtype=jnp.float32)
    target = jax.random.randint(k2, (B,), 0, C, dtype=jnp.int32)
    loss = class_scores_loss(batch, target)
    jax.block_until_ready(loss)
    ref = _reference(batch, target)
    assert jnp.allclose(loss, ref, atol=1e-6, rtol=1e-6), (loss, ref)

    # 2) Non-multiple-of-8 batch + forced small tile: multi-tile grid,
    #    unpadded partial last block and in-kernel row masking.
    B2, C2 = 20, 96
    batch2 = jax.random.normal(k3, (B2, C2), dtype=jnp.float32)
    target2 = jax.random.randint(k4, (B2,), 0, C2, dtype=jnp.int32)
    loss2 = class_scores_loss(batch2, target2, tile_b=8)
    jax.block_until_ready(loss2)
    ref2 = _reference(batch2, target2)
    assert jnp.allclose(loss2, ref2, atol=1e-6, rtol=1e-6), (loss2, ref2)

    # 3) Force the large-C scalar-prefetch gather path at a small 128-aligned C
    #    to exercise the per-row window DMAs, row clamping and masking.
    B3, C3 = 20, 256
    batch3 = jax.random.normal(k5, (B3, C3), dtype=jnp.float32)
    target3 = jax.random.randint(k6, (B3,), 0, C3, dtype=jnp.int32)
    loss3 = class_scores_loss(batch3, target3, tile_b=8, use_gather=True)
    jax.block_until_ready(loss3)
    ref3 = _reference(batch3, target3)
    assert jnp.allclose(loss3, ref3, atol=1e-6, rtol=1e-6), (loss3, ref3)

    print("KERNEL_OK")
</pallas_src>

<mosaic_0001>
module attributes {stable_mosaic.version = 11 : i64} {
  func.func @_class_scores_stream_kernel(%arg0: i32, %arg1: memref<8x4xf32, #tpu.memory_space<vmem>>, %arg2: memref<8x1xi32, #tpu.memory_space<vmem>>, %arg3: memref<1x128xf32, #tpu.memory_space<vmem>>) attributes {dimension_semantics = [#tpu.dimension_semantics<parallel>], iteration_bounds = array<i64: 1>, scalar_prefetch = 0 : i64, scratch_operands = 0 : i64, tpu.core_type = #tpu.core_type<tc>, window_params = [{transform_indices = @transform_0, window_bounds = array<i64: 8, 4>}, {transform_indices = @transform_1, window_bounds = array<i64: 8, 1>}, {transform_indices = @transform_2, window_bounds = array<i64: 1, 128>}]} {
    %c0 = arith.constant 0 : index
    %c0_0 = arith.constant 0 : index
    %0 = vector.load %arg1[%c0, %c0_0] : memref<8x4xf32, #tpu.memory_space<vmem>>, vector<8x4xf32>
    %c0_1 = arith.constant 0 : index
    %c0_2 = arith.constant 0 : index
    %1 = vector.load %arg2[%c0_1, %c0_2] : memref<8x1xi32, #tpu.memory_space<vmem>>, vector<8x1xi32>
    %2 = tpu.iota {dimensions = array<i32: 1>} : vector<8x4xi32>
    %3 = vector.broadcast %1 : vector<8x1xi32> to vector<8x4xi32>
    %4 = arith.cmpi eq, %2, %3 : vector<8x4xi32>
    %cst = arith.constant 0.000000e+00 : f32
    %5 = vector.broadcast %cst : f32 to vector<8x4xf32>
    %6 = arith.select %4, %0, %5 : vector<8x4xi1>, vector<8x4xf32>
    %cst_3 = arith.constant dense<0.000000e+00> : vector<8xf32>
    %7 = vector.multi_reduction <add>, %6, %cst_3 [1] : vector<8x4xf32> to vector<8xf32>
    %8 = vector.shape_cast %7 : vector<8xf32> to vector<8x1xf32>
    %c8_i32 = arith.constant 8 : i32
    %9 = arith.muli %arg0, %c8_i32 : i32
    %10 = tpu.iota {dimensions = array<i32: 0>} : vector<8x1xi32>
    %11 = vector.broadcast %9 : i32 to vector<8x1xi32>
    %12 = arith.addi %11, %10 : vector<8x1xi32>
    %c2_i32 = arith.constant 2 : i32
    %13 = vector.broadcast %c2_i32 : i32 to vector<8x1xi32>
    %14 = arith.cmpi slt, %12, %13 : vector<8x1xi32>
    %cst_4 = arith.constant 0.000000e+00 : f32
    %15 = vector.broadcast %cst_4 : f32 to vector<8x1xf32>
    %16 = arith.select %14, %8, %15 : vector<8x1xi1>, vector<8x1xf32>
    %cst_5 = arith.constant dense<0.000000e+00> : vector<1xf32>
    %17 = vector.multi_reduction <add>, %16, %cst_5 [0] : vector<8x1xf32> to vector<1xf32>
    %18 = vector.shape_cast %17 : vector<1xf32> to vector<1x1xf32>
    %19 = vector.shape_cast %18 : vector<1x1xf32> to vector<1x1xf32>
    %20 = vector.broadcast %19 : vector<1x1xf32> to vector<1x128xf32>
    %c0_6 = arith.constant 0 : index
    %c0_7 = arith.constant 0 : index
    %21 = vector.load %arg3[%c0_6, %c0_7] : memref<1x128xf32, #tpu.memory_space<vmem>>, vector<1x128xf32>
    tpu.vector_store %arg3[%c0_6, %c0_7], %20 {strides = array<i32>} : memref<1x128xf32, #tpu.memory_space<vmem>>, vector<1x128xf32>,
    return
  }
  func.func @transform_0(%arg0: i32) -> (i32, i32) {
    %c0_i32 = arith.constant 0 : i32
    %c0_i32_0 = arith.constant 0 : i32
    return %arg0, %c0_i32 : i32, i32
  }
  func.func @transform_1(%arg0: i32) -> (i32, i32) {
    %c0_i32 = arith.constant 0 : i32
    %c0_i32_0 = arith.constant 0 : i32
    return %arg0, %c0_i32 : i32, i32
  }
  func.func @transform_2(%arg0: i32) -> (i32, i32) {
    %c0_i32 = arith.constant 0 : i32
    %c0_i32_0 = arith.constant 0 : i32
    return %arg0, %c0_i32 : i32, i32
  }
}

</mosaic_0001>

<llo_original>
// kernel: tpu_custom_call.1
$region0: #{tpu_custom_call.1}
  #allocation0 [shape = 'u32[]', space=smem, size = 0x4, offset = 0x4, fixed_abs, tag = 'smem constant byte address 0x4 - core index']
  #allocation1 [shape = 'u32[144,128]{1,0:T(1,128)}', space=vmem, size = 0x12000, scoped, tag = 'internal scratch']
  %s0 = inlined_call_operand.vmem [shape: f32[2,4], index: 0, kind: input, shape index: {}]
  %s1 = inlined_call_operand.vmem [shape: s32[2,1], index: 1, kind: input, shape index: {}]
  %s2 = inlined_call_operand.hbm [shape: f32[1,128], index: 2, kind: output, shape index: {}]
  %s3 = sld [smem:[#allocation0]]
  $region18: #{tpu_custom_call.1} parent=0
    _
  %s5 = ssub.s32 1, %s3
  %s6 = scalar_select 0, %s5, %s3
  $region1: #{tpu_custom_call.1} parent=0
    #allocation2 [shape = 'u8[512]{0}', space=vmem, size = 0x400, scoped, tag = 'output window, operand 0, single buffered']
    #allocation3 [shape = 's32[1]{0}', space=sflag, size = 0x4, scoped, tag = 'scoped memory for tpu_custom_call.1']
    %7 = vsyncpa [#allocation3], 0
    // Predicated region
    $region2: #{tpu_custom_call.1} parent=1 // pred_check
      _
    $region3: #{tpu_custom_call.1} parent=1 // pred_check_branch
      %9 = sbr.rel (0) target = $region5
    $region4: #{tpu_custom_call.1} parent=1 // pred_region
      _
    $region5: #{tpu_custom_call.1} parent=1 // pred_fallthru
      _
    // Predicated region
    $region6: #{tpu_custom_call.1} parent=1 // pred_check
      _
    $region7: #{tpu_custom_call.1} parent=1 // pred_check_branch
      %11 = sbr.rel (0) target = $region9
    $region8: #{tpu_custom_call.1} parent=1 // pred_region
      _
    $region9: #{tpu_custom_call.1} parent=1 // pred_fallthru
      _
    %v12 = vld [vmem:[%s0] sm:$0xff]
    %v13 = vld [vmem:[%s1] sm:$0xff]
    %v14 = vlaneseq
    %v15 = vand.u32 %v14, 127
    %16 = vset.pattern.permute.xlu0 0
    %17 = vperm.xlu0 %16, %v13
    %v18 = vpop.permute.xlu0 %17
    %vm19 = vcmp.eq.s32.totalorder %v15, %v18
    %v20 = vsel %vm19, %v12, 0.0
    %vm21 = vcmask 31744
    %v22 = vsel %vm21, %v20, 0.0
    %23 = vadd.xlane.f32.xlu0 %v22
    %v24 = vpop.xlane.xlu0 %23
    %s25 = smul.u32 0, 8
    %v26 = vlaneseq
    %v27 = vshrl.u32 %v26, 7
    %v28 = vstv %s25
    %v29 = vadd.s32 %v28, %v27
    %vm30 = vcmp.lt.s32.totalorder %v29, 2
    %v31 = vsel %vm30, %v24, 0.0
    %v32 = vrot.slane %v31, 4
    %v33 = vadd.f32 %v31, %v32
    %v34 = vrot.slane %v33, 2
    %v35 = vadd.f32 %v33, %v34
    %v36 = vrot.slane %v35, 1
    %v37 = vadd.f32 %v35, %v36
    %38 = vst [vmem:[#allocation2] sm:$0x1] %v37
    // Predicated region
    $region10: #{tpu_custom_call.1} parent=1 // pred_check
      _
    $region11: #{tpu_custom_call.1} parent=1 // pred_check_branch
      %40 = sbr.rel (0) target = $region13
    $region12: #{tpu_custom_call.1} parent=1 // pred_region
      %s42 = ssub.s32 16, 16
      %43 = vsyncadd [#allocation3], %s42
      %s45 = sshll.u32 [#allocation2], 4
      %s46 = int_to_ptr.vmem [resolvable:$true] %s45
      %48 = dma.vmem_to_hbm [thread:$0]  %s46, 16, %s2, [#allocation3]
    $region13: #{tpu_custom_call.1} parent=1 // pred_fallthru
      _
    // Predicated region
    $region14: #{tpu_custom_call.1} parent=1 // pred_check
      _
    $region15: #{tpu_custom_call.1} parent=1 // pred_check_branch
      %50 = sbr.rel (0) target = $region17
    $region16: #{tpu_custom_call.1} parent=1 // pred_region
      %51 = dma.done [#allocation3], 16
    $region17: #{tpu_custom_call.1} parent=1 // pred_fallthru
      _
    %52 = vsyncpa [#allocation3], 1

</llo_original>
